<compile_context>
chip_gen: v7x
topology: tpu7x:2x2x1
jax: 0.10.0
libtpu: 0.0.40
codegen_flags: <defaults>
</compile_context>

<pallas_src>
import jax
import jax.numpy as jnp
from jax.experimental import pallas as pl
from jax.experimental.pallas import tpu as pltpu

_LANES = 128  # vreg lane width: the output slab is padded to this width so the
              # epilogue is one unmasked store instead of narrow masked stores.


# ------------------------------- kernel --------------------------------------

def _mask_attention_kernel(x_ref, wt_ref, out_ref):
    """x: (Bp, S, E), wt: (E, 1) -> out slab (Bp, 128) = [pooled | softmax | 0]."""
    x = x_ref[...]                                    # (Bp, S, E) f32
    wt = wt_ref[...]                                  # (E, 1)     f32
    Bp, S, E = x.shape

    # ---- attention scores on the MXU: (Bp*S, E) @ (E, 1) -> (Bp, S) --------
    s = jnp.dot(x.reshape(Bp * S, E), wt,
                preferred_element_type=jnp.float32)   # (Bp*S, 1)
    scores = s.reshape(Bp, S)

    # ---- softmax over S ------------------------------------------------------
    # TODO(synk): the reference's masked_fill is not in-place and its result is
    # discarded, so the mask has no effect; we faithfully skip it here.
    m = jnp.max(scores, axis=-1, keepdims=True)
    e = jnp.exp(scores - m)
    denom = jnp.sum(e, axis=-1, keepdims=True)
    p = e * pl.reciprocal(denom, approx=True)         # (Bp, S), EUP reciprocal

    # ---- weighted pooling on the MXU: (Bp,1,S) @ (Bp,S,E) -> (Bp,1,E) -------
    pooled = jnp.einsum("bqs,bse->bqe", p.reshape(Bp, 1, S), x,
                        preferred_element_type=jnp.float32)
    pooled = pooled.reshape(Bp, E)

    # ---- lane-dense epilogue: one (Bp, 128) slab, single dense store --------
    pad = jnp.zeros((Bp, _LANES - E - S), jnp.float32)
    out_ref[...] = jnp.concatenate([pooled, p, pad], axis=-1).astype(out_ref.dtype)


# ------------------------------- wrapper --------------------------------------

def mask_attention(x, w, mask=None):
    """MaskAttention forward.

    x:    (B, S, E) float32
    w:    (1, E)    float32  -- PyTorch nn.Linear(E, 1, bias=False).weight
    mask: (B, S) or None. Accepted but has no effect, faithful to the
          reference's discarded, non-in-place masked_fill.
    Returns (outputs (B, E), scores (B, 1, S))  -- same as the PyTorch module.
    """
    del mask  # intentionally unused -- see docstring.
    B, S, E = x.shape
    assert E + S <= _LANES, "output-slab packing assumes E + S <= 128"

    # Pad the batch (sublane) dim up to a multiple of 8; zero rows give a
    # uniform softmax over zero features -> zero pooled output, sliced away.
    Bp = max(8, -(-B // 8) * 8)
    if Bp != B:
        x = jnp.concatenate([x, jnp.zeros((Bp - B, S, E), x.dtype)], axis=0)

    wt = jnp.transpose(w.astype(jnp.float32))          # (E, 1) column for the MXU

    slab = pl.pallas_call(
        _mask_attention_kernel,
        out_shape=jax.ShapeDtypeStruct((Bp, _LANES), jnp.float32),
        in_specs=[pl.BlockSpec(memory_space=pltpu.MemorySpace.VMEM),
                  pl.BlockSpec(memory_space=pltpu.MemorySpace.VMEM)],
        out_specs=pl.BlockSpec(memory_space=pltpu.MemorySpace.VMEM),
    )(x.astype(jnp.float32), wt)

    outputs = slab[:B, :E]                             # (B, E)
    scores = slab[:B, E:E + S][:, None, :]             # (B, 1, S)
    return outputs, scores


# -------------------------- pure-JAX reference --------------------------------

def _reference(x, w):
    scores = jnp.einsum("bse,e->bs", x, w[0])
    p = jax.nn.softmax(scores, axis=-1)
    out = jnp.einsum("bs,bse->be", p, x)
    return out, p[:, None, :]


# --------------------------------- main ----------------------------------------

if __name__ == "__main__":
    B, S, E = 4, 8, 32

    key = jax.random.PRNGKey(0)
    kx, kw, km = jax.random.split(key, 3)
    x = jax.random.normal(kx, (B, S, E), jnp.float32)
    w = jax.random.normal(kw, (1, E), jnp.float32) / jnp.sqrt(float(E))
    mask = (jax.random.uniform(km, (B, S)) > 0.2).astype(jnp.float32)  # ignored

    fwd = jax.jit(mask_attention)
    outputs, scores = jax.block_until_ready(fwd(x, w, mask))

    ref_out, ref_scores = _reference(x, w)

    assert outputs.shape == (B, E)
    assert scores.shape == (B, 1, S)
    assert bool(jnp.all(jnp.isfinite(outputs)))
    assert bool(jnp.all(jnp.isfinite(scores)))
    # Loose tolerance: pl.reciprocal(approx=True) is a low-precision EUP op.
    assert bool(jnp.allclose(outputs, ref_out, atol=2e-2, rtol=2e-2))
    assert bool(jnp.allclose(scores, ref_scores, atol=2e-2, rtol=2e-2))

    print("KERNEL_OK")
</pallas_src>

<mosaic_0001>
module attributes {stable_mosaic.version = 11 : i64} {
  func.func @_mask_attention_kernel(%arg0: memref<8x8x32xf32, #tpu.memory_space<vmem>>, %arg1: memref<32x1xf32, #tpu.memory_space<vmem>>, %arg2: memref<8x128xf32, #tpu.memory_space<vmem>>) attributes {dimension_semantics = [], scalar_prefetch = 0 : i64, scratch_operands = 0 : i64, tpu.core_type = #tpu.core_type<tc>} {
    %c0 = arith.constant 0 : index
    %c0_0 = arith.constant 0 : index
    %c0_1 = arith.constant 0 : index
    %0 = vector.load %arg0[%c0, %c0_0, %c0_1] : memref<8x8x32xf32, #tpu.memory_space<vmem>>, vector<8x8x32xf32>
    %c0_2 = arith.constant 0 : index
    %c0_3 = arith.constant 0 : index
    %1 = vector.load %arg1[%c0_2, %c0_3] : memref<32x1xf32, #tpu.memory_space<vmem>>, vector<32x1xf32>
    %2 = vector.shape_cast %0 : vector<8x8x32xf32> to vector<64x32xf32>
    %cst = arith.constant dense<0.000000e+00> : vector<64x1xf32>
    %3 = tpu.matmul %2, %1, %cst {dimension_numbers = #tpu.dot_dimension_numbers<[1], [0], [0], [1], [0, 0, 1, 1], [], []>} : vector<64x32xf32>, vector<32x1xf32>, vector<64x1xf32> -> vector<64x1xf32>
    %4 = vector.shape_cast %3 : vector<64x1xf32> to vector<8x8xf32>
    %cst_4 = arith.constant dense<0xFF800000> : vector<8xf32>
    %5 = vector.multi_reduction <maximumf>, %4, %cst_4 [1] : vector<8x8xf32> to vector<8xf32>
    %6 = vector.shape_cast %5 : vector<8xf32> to vector<8x1xf32>
    %7 = vector.broadcast %6 : vector<8x1xf32> to vector<8x8xf32>
    %8 = arith.subf %4, %7 : vector<8x8xf32>
    %9 = math.exp %8 : vector<8x8xf32>
    %cst_5 = arith.constant dense<0.000000e+00> : vector<8xf32>
    %10 = vector.multi_reduction <add>, %9, %cst_5 [1] : vector<8x8xf32> to vector<8xf32>
    %11 = vector.shape_cast %10 : vector<8xf32> to vector<8x1xf32>
    %12 = tpu.reciprocal %11 {approx = true} : vector<8x1xf32> -> vector<8x1xf32>
    %13 = vector.broadcast %12 : vector<8x1xf32> to vector<8x8xf32>
    %14 = arith.mulf %9, %13 : vector<8x8xf32>
    %15 = vector.shape_cast %14 : vector<8x8xf32> to vector<8x1x8xf32>
    "tpu.trace_start"() <{level = 10 : i32, message = "bqs,bse->bqe"}> : () -> ()
    %cst_6 = arith.constant dense<0.000000e+00> : vector<8x1x32xf32>
    %16 = tpu.matmul %15, %0, %cst_6 {dimension_numbers = #tpu.dot_dimension_numbers<[2], [1], [1], [2], [0, 0, 0, 1, 1, 2], [0], [0]>} : vector<8x1x8xf32>, vector<8x8x32xf32>, vector<8x1x32xf32> -> vector<8x1x32xf32>
    "tpu.trace_stop"() : () -> ()
    %17 = vector.shape_cast %16 : vector<8x1x32xf32> to vector<8x32xf32>
    %cst_7 = arith.constant 0.000000e+00 : f32
    %18 = vector.broadcast %cst_7 : f32 to vector<8x88xf32>
    %19 = tpu.concatenate %17, %14, %18 in 1 : vector<8x32xf32>, vector<8x8xf32>, vector<8x88xf32> -> vector<8x128xf32>
    %c0_8 = arith.constant 0 : index
    %c0_9 = arith.constant 0 : index
    %20 = vector.load %arg2[%c0_8, %c0_9] : memref<8x128xf32, #tpu.memory_space<vmem>>, vector<8x128xf32>
    tpu.vector_store %arg2[%c0_8, %c0_9], %19 {strides = array<i32>} : memref<8x128xf32, #tpu.memory_space<vmem>>, vector<8x128xf32>,
    return
  }
}

</mosaic_0001>

<llo_original>
// kernel: mask_attention.1
$region0: #{mask_attention.1}
  #allocation0 [shape = 'u32[]', space=smem, size = 0x4, offset = 0x4, fixed_abs, tag = 'smem constant byte address 0x4 - core index']
  #allocation1 [shape = 'u32[144,128]{1,0:T(1,128)}', space=vmem, size = 0x12000, scoped, tag = 'internal scratch']
  %s0 = inlined_call_operand.vmem [shape: f32[8,8,32], index: 0, kind: input, shape index: {}]
  %s1 = inlined_call_operand.vmem [shape: f32[32,1], index: 1, kind: input, shape index: {}]
  %s2 = inlined_call_operand.vmem [shape: f32[8,128], index: 2, kind: output, shape index: {}]
  %s3 = sld [smem:[#allocation0]]
  $region18: #{mask_attention.1} parent=0
    _
  %s5 = ssub.s32 1, %s3
  %s6 = scalar_select 0, %s5, %s3
  // Predicated region
  $region2: #{mask_attention.1} parent=0 // pred_check
    _
  $region3: #{mask_attention.1} parent=0 // pred_check_branch
    %8 = sbr.rel (0) target = $region5
  $region4: #{mask_attention.1} parent=0 // pred_region
    _
  $region5: #{mask_attention.1} parent=0 // pred_fallthru
    _
  // Predicated region
  $region6: #{mask_attention.1} parent=0 // pred_check
    _
  $region7: #{mask_attention.1} parent=0 // pred_check_branch
    %10 = sbr.rel (0) target = $region9
  $region8: #{mask_attention.1} parent=0 // pred_region
    _
  $region9: #{mask_attention.1} parent=0 // pred_fallthru
    _
  %v11 = vld [vmem:[%s0] sm:$0xff]
  %v12 = vld [vmem:[%s0 + $0x8] sm:$0xff]
  %v13 = vld [vmem:[%s0 + $0x10] sm:$0xff]
  %v14 = vld [vmem:[%s0 + $0x18] sm:$0xff]
  %v15 = vld [vmem:[%s0 + $0x20] sm:$0xff]
  %v16 = vld [vmem:[%s0 + $0x28] sm:$0xff]
  %v17 = vld [vmem:[%s0 + $0x30] sm:$0xff]
  %v18 = vld [vmem:[%s0 + $0x38] sm:$0xff]
  %v19 = vld [vmem:[%s1] sm:$0xff]
  %v20 = vld [vmem:[%s1 + $0x8] sm:$0xff]
  %v21 = vld [vmem:[%s1 + $0x10] sm:$0xff]
  %v22 = vld [vmem:[%s1 + $0x18] sm:$0xff]
  %vm23 = vcmask 261120
  %v25 = vsel %vm23, %v11, 0
  %v28 = vsel %vm23, %v12, 0
  %v31 = vsel %vm23, %v13, 0
  %v34 = vsel %vm23, %v14, 0
  %v37 = vsel %vm23, %v15, 0
  %v40 = vsel %vm23, %v16, 0
  %v43 = vsel %vm23, %v17, 0
  %v46 = vsel %vm23, %v18, 0
  %48 = vmatprep.subr.mxu0 0.0
  %49 = vmatpush1.msra.mxu0 %v19
  %50 = vmatprep.subr.mxu0 0.0
  %51 = vmatpush1.msra.mxu0 %v20
  %52 = vmatprep.subr.mxu0 0.0
  %53 = vmatpush1.msra.mxu0 %v21
  %54 = vmatprep.subr.mxu0 0.0
  %55 = vmatpush1.msra.mxu0 %v22
  %56 = vmatprep.subr.mxu0 0.0
  %57 = vmatpush1.msra.mxu0 0.0
  %58 = vmatprep.subr.mxu0 0.0
  %59 = vmatpush1.msra.mxu0 0.0
  %60 = vmatprep.subr.mxu0 0.0
  %61 = vmatpush1.msra.mxu0 0.0
  %62 = vmatprep.subr.mxu0 0.0
  %63 = vmatpush1.msra.mxu0 0.0
  %64 = vmatprep.subr.mxu0 0.0
  %65 = vmatpush1.msra.mxu0 0.0
  %66 = vmatprep.subr.mxu0 0.0
  %67 = vmatpush1.msra.mxu0 0.0
  %68 = vmatprep.subr.mxu0 0.0
  %69 = vmatpush1.msra.mxu0 0.0
  %70 = vmatprep.subr.mxu0 0.0
  %71 = vmatpush1.msra.mxu0 0.0
  %72 = vmatprep.subr.mxu0 0.0
  %73 = vmatpush1.msra.mxu0 0.0
  %74 = vmatprep.subr.mxu0 0.0
  %75 = vmatpush1.msra.mxu0 0.0
  %76 = vmatprep.subr.mxu0 0.0
  %77 = vmatpush1.msra.mxu0 0.0
  %78 = vmatprep.subr.mxu0 0.0
  %79 = vmatpush1.msra.mxu0 0.0
  %80 = vmatprep.subr.mxu0 0.0
  %81 = vmatpush1.msra.mxu0 0.0
  %82 = vmatprep.subr.mxu0 0.0
  %83 = vmatpush1.msra.mxu0 0.0
  %84 = vmatprep.subr.mxu0 0.0
  %85 = vmatpush1.msra.mxu0 0.0
  %86 = vmatprep.subr.mxu0 0.0
  %87 = vmatpush1.msra.mxu0 0.0
  %88 = vmatprep.subr.mxu0 0.0
  %89 = vmatpush1.msra.mxu0 0.0
  %90 = vmatprep.subr.mxu0 0.0
  %91 = vmatpush1.msra.mxu0 0.0
  %92 = vmatprep.subr.mxu0 0.0
  %93 = vmatpush1.msra.mxu0 0.0
  %94 = vmatprep.subr.mxu0 0.0
  %95 = vmatpush1.msra.mxu0 0.0
  %96 = vmatprep.subr.mxu0 0.0
  %97 = vmatpush1.msra.mxu0 0.0
  %98 = vmatprep.subr.mxu0 0.0
  %99 = vmatpush1.msra.mxu0 0.0
  %100 = vmatprep.subr.mxu0 0.0
  %101 = vmatpush1.msra.mxu0 0.0
  %102 = vmatprep.subr.mxu0 0.0
  %103 = vmatpush1.msra.mxu0 0.0
  %104 = vmatprep.subr.mxu0 0.0
  %105 = vmatpush1.msra.mxu0 0.0
  %106 = vmatprep.subr.mxu0 0.0
  %107 = vmatpush1.msra.mxu0 0.0
  %108 = vmatprep.subr.mxu0 0.0
  %109 = vmatpush1.msra.mxu0 0.0
  %110 = vmatprep.subr.mxu0 0.0
  %111 = vmatpush1.msra.mxu0 0.0
  %112 = vmatprep.mubr.f32.mxu0 0.0
  %113 = vmatmul.mubr.f32.gmra.mrb[0].mxu0 %v25
  %v114 = vpop.f32.mrb[0].mxu0
  %v115 = vadd.f32 0.0, %v114
  %v116 = vpop.f32.mrb[0].mxu0
  %117 = vmatprep.mubr.f32.mxu0 0.0
  %118 = vmatmul.mubr.f32.gmra.mrb[0].mxu0 %v28
  %v119 = vpop.f32.mrb[0].mxu0
  %v120 = vadd.f32 0.0, %v119
  %v121 = vpop.f32.mrb[0].mxu0
  %122 = vmatprep.mubr.f32.mxu0 0.0
  %123 = vmatmul.mubr.f32.gmra.mrb[0].mxu0 %v31
  %v124 = vpop.f32.mrb[0].mxu0
  %v125 = vadd.f32 0.0, %v124
  %v126 = vpop.f32.mrb[0].mxu0
  %127 = vmatprep.mubr.f32.mxu0 0.0
  %128 = vmatmul.mubr.f32.gmra.mrb[0].mxu0 %v34
  %v129 = vpop.f32.mrb[0].mxu0
  %v130 = vadd.f32 0.0, %v129
  %v131 = vpop.f32.mrb[0].mxu0
  %132 = vmatprep.mubr.f32.mxu0 0.0
  %133 = vmatmul.mubr.f32.gmra.mrb[0].mxu0 %v37
  %v134 = vpop.f32.mrb[0].mxu0
  %v135 = vadd.f32 0.0, %v134
  %v136 = vpop.f32.mrb[0].mxu0
  %137 = vmatprep.mubr.f32.mxu0 0.0
  %138 = vmatmul.mubr.f32.gmra.mrb[0].mxu0 %v40
  %v139 = vpop.f32.mrb[0].mxu0
  %v140 = vadd.f32 0.0, %v139
  %v141 = vpop.f32.mrb[0].mxu0
  %142 = vmatprep.mubr.f32.mxu0 0.0
  %143 = vmatmul.mubr.f32.gmra.mrb[0].mxu0 %v43
  %v144 = vpop.f32.mrb[0].mxu0
  %v145 = vadd.f32 0.0, %v144
  %v146 = vpop.f32.mrb[0].mxu0
  %147 = vmatprep.mubr.f32.mxu0 0.0
  %148 = vmatmul.mubr.f32.gmra.mrb[0].mxu0 %v46
  %v149 = vpop.f32.mrb[0].mxu0
  %v150 = vadd.f32 0.0, %v149
  %v151 = vpop.f32.mrb[0].mxu0
  %152 = vdwg.mxu0
  %161 = vset.pattern.permute.xlu0 0
  %162 = vperm.xlu0 %161, %v115
  %v163 = vpop.permute.xlu0 %162
  %164 = vset.pattern.permute.xlu0 0
  %165 = vperm.xlu0 %164, %v120
  %v166 = vpop.permute.xlu0 %165
  %167 = vset.pattern.permute.xlu0 0
  %168 = vperm.xlu0 %167, %v125
  %v169 = vpop.permute.xlu0 %168
  %170 = vset.pattern.permute.xlu0 0
  %171 = vperm.xlu0 %170, %v130
  %v172 = vpop.permute.xlu0 %171
  %173 = vset.pattern.permute.xlu0 0
  %174 = vperm.xlu0 %173, %v135
  %v175 = vpop.permute.xlu0 %174
  %176 = vset.pattern.permute.xlu0 0
  %177 = vperm.xlu0 %176, %v140
  %v178 = vpop.permute.xlu0 %177
  %179 = vset.pattern.permute.xlu0 0
  %180 = vperm.xlu0 %179, %v145
  %v181 = vpop.permute.xlu0 %180
  %182 = vset.pattern.permute.xlu0 0
  %183 = vperm.xlu0 %182, %v150
  %v184 = vpop.permute.xlu0 %183
  %v185 = vlaneseq
  %v186 = vand.u32 %v185, 127
  %v187 = vlaneseq
  %v188 = vshrl.u32 %v187, 7
  %v189 = vsub.s32 %v186, %v188
  %v190 = vrot.slane %v163, %v189
  %v191 = vlaneseq
  %v192 = vshrl.u32 %v191, 7
  %v193 = vsub.s32 %v186, %v192
  %v194 = vrot.slane %v166, %v193
  %v195 = vlaneseq
  %v196 = vshrl.u32 %v195, 7
  %v197 = vsub.s32 %v186, %v196
  %v198 = vrot.slane %v169, %v197
  %v199 = vlaneseq
  %v200 = vshrl.u32 %v199, 7
  %v201 = vsub.s32 %v186, %v200
  %v202 = vrot.slane %v172, %v201
  %v203 = vlaneseq
  %v204 = vshrl.u32 %v203, 7
  %v205 = vsub.s32 %v186, %v204
  %v206 = vrot.slane %v175, %v205
  %v207 = vlaneseq
  %v208 = vshrl.u32 %v207, 7
  %v209 = vsub.s32 %v186, %v208
  %v210 = vrot.slane %v178, %v209
  %v211 = vlaneseq
  %v212 = vshrl.u32 %v211, 7
  %v213 = vsub.s32 %v186, %v212
  %v214 = vrot.slane %v181, %v213
  %v215 = vlaneseq
  %v216 = vshrl.u32 %v215, 7
  %v217 = vsub.s32 %v186, %v216
  %v218 = vrot.slane %v184, %v217
  %vm219 = vcmask 1041409
  %v220 = vsel %vm219, %v194, %v190
  %vm221 = vcmask 1042434
  %v222 = vsel %vm221, %v198, %v220
  %vm223 = vcmask 1043459
  %v224 = vsel %vm223, %v202, %v222
  %vm225 = vcmask 1044484
  %v226 = vsel %vm225, %v206, %v224
  %vm227 = vcmask 1045509
  %v228 = vsel %vm227, %v210, %v226
  %vm229 = vcmask 1046534
  %v230 = vsel %vm229, %v214, %v228
  %vm231 = vcmask 1047559
  %v232 = vsel %vm231, %v218, %v230
  %vm234 = vcmask 64512
  %v235 = vsel %vm234, %v232, -inf
  %236 = vmax.xlane.f32.xlu0 %v235
  %v237 = vpop.xlane.xlu0 %236
  %v239 = vlaneseq
  %v240 = vshrl.u32 %v239, 7
  %v241 = vsub.s32 0, %v240
  %v242 = vrot.slane %v237, %v241
  %v243 = vlaneseq
  %v244 = vshrl.u32 %v243, 7
  %v245 = vsub.s32 1, %v244
  %v246 = vrot.slane %v237, %v245
  %v247 = vlaneseq
  %v248 = vshrl.u32 %v247, 7
  %v249 = vsub.s32 2, %v248
  %v250 = vrot.slane %v237, %v249
  %v251 = vlaneseq
  %v252 = vshrl.u32 %v251, 7
  %v253 = vsub.s32 3, %v252
  %v254 = vrot.slane %v237, %v253
  %v255 = vlaneseq
  %v256 = vshrl.u32 %v255, 7
  %v257 = vsub.s32 4, %v256
  %v258 = vrot.slane %v237, %v257
  %v259 = vlaneseq
  %v260 = vshrl.u32 %v259, 7
  %v261 = vsub.s32 5, %v260
  %v262 = vrot.slane %v237, %v261
  %v263 = vlaneseq
  %v264 = vshrl.u32 %v263, 7
  %v265 = vsub.s32 6, %v264
  %v266 = vrot.slane %v237, %v265
  %v267 = vlaneseq
  %v268 = vshrl.u32 %v267, 7
  %v269 = vsub.s32 7, %v268
  %v270 = vrot.slane %v237, %v269
  %v279 = vsub.f32 %v115, %v242
  %v280 = vsub.f32 %v120, %v246
  %v281 = vsub.f32 %v125, %v250
  %v282 = vsub.f32 %v130, %v254
  %v283 = vsub.f32 %v135, %v258
  %v284 = vsub.f32 %v140, %v262
  %v285 = vsub.f32 %v145, %v266
  %v286 = vsub.f32 %v150, %v270
  %v287 = vmul.f32 %v279, 1.442695
  %v288 = vpow.pop %v287
  %v289 = vmul.f32 %v280, 1.442695
  %v290 = vpow.pop %v289
  %v291 = vmul.f32 %v281, 1.442695
  %v292 = vpow.pop %v291
  %v293 = vmul.f32 %v282, 1.442695
  %v294 = vpow.pop %v293
  %v295 = vmul.f32 %v283, 1.442695
  %v296 = vpow.pop %v295
  %v297 = vmul.f32 %v284, 1.442695
  %v298 = vpow.pop %v297
  %v299 = vmul.f32 %v285, 1.442695
  %v300 = vpow.pop %v299
  %v301 = vmul.f32 %v286, 1.442695
  %v302 = vpow.pop %v301
  %311 = vset.pattern.permute.xlu0 0
  %312 = vperm.xlu0 %311, %v288
  %v313 = vpop.permute.xlu0 %312
  %314 = vset.pattern.permute.xlu0 0
  %315 = vperm.xlu0 %314, %v290
  %v316 = vpop.permute.xlu0 %315
  %317 = vset.pattern.permute.xlu0 0
  %318 = vperm.xlu0 %317, %v292
  %v319 = vpop.permute.xlu0 %318
  %320 = vset.pattern.permute.xlu0 0
  %321 = vperm.xlu0 %320, %v294
  %v322 = vpop.permute.xlu0 %321
  %323 = vset.pattern.permute.xlu0 0
  %324 = vperm.xlu0 %323, %v296
  %v325 = vpop.permute.xlu0 %324
  %326 = vset.pattern.permute.xlu0 0
  %327 = vperm.xlu0 %326, %v298
  %v328 = vpop.permute.xlu0 %327
  %329 = vset.pattern.permute.xlu0 0
  %330 = vperm.xlu0 %329, %v300
  %v331 = vpop.permute.xlu0 %330
  %332 = vset.pattern.permute.xlu0 0
  %333 = vperm.xlu0 %332, %v302
  %v334 = vpop.permute.xlu0 %333
  %v335 = vlaneseq
  %v336 = vshrl.u32 %v335, 7
  %v337 = vsub.s32 %v186, %v336
  %v338 = vrot.slane %v313, %v337
  %v339 = vlaneseq
  %v340 = vshrl.u32 %v339, 7
  %v341 = vsub.s32 %v186, %v340
  %v342 = vrot.slane %v316, %v341
  %v343 = vlaneseq
  %v344 = vshrl.u32 %v343, 7
  %v345 = vsub.s32 %v186, %v344
  %v346 = vrot.slane %v319, %v345
  %v347 = vlaneseq
  %v348 = vshrl.u32 %v347, 7
  %v349 = vsub.s32 %v186, %v348
  %v350 = vrot.slane %v322, %v349
  %v351 = vlaneseq
  %v352 = vshrl.u32 %v351, 7
  %v353 = vsub.s32 %v186, %v352
  %v354 = vrot.slane %v325, %v353
  %v355 = vlaneseq
  %v356 = vshrl.u32 %v355, 7
  %v357 = vsub.s32 %v186, %v356
  %v358 = vrot.slane %v328, %v357
  %v359 = vlaneseq
  %v360 = vshrl.u32 %v359, 7
  %v361 = vsub.s32 %v186, %v360
  %v362 = vrot.slane %v331, %v361
  %v363 = vlaneseq
  %v364 = vshrl.u32 %v363, 7
  %v365 = vsub.s32 %v186, %v364
  %v366 = vrot.slane %v334, %v365
  %v367 = vsel %vm219, %v342, %v338
  %v368 = vsel %vm221, %v346, %v367
  %v369 = vsel %vm223, %v350, %v368
  %v370 = vsel %vm225, %v354, %v369
  %v371 = vsel %vm227, %v358, %v370
  %v372 = vsel %vm229, %v362, %v371
  %v373 = vsel %vm231, %v366, %v372
  %v375 = vsel %vm234, %v373, 0.0
  %376 = vadd.xlane.f32.xlu0 %v375
  %v377 = vpop.xlane.xlu0 %376
  %v378 = vrcp.pop %v377
  %v380 = vlaneseq
  %v381 = vshrl.u32 %v380, 7
  %v382 = vsub.s32 0, %v381
  %v383 = vrot.slane %v378, %v382
  %v384 = vlaneseq
  %v385 = vshrl.u32 %v384, 7
  %v386 = vsub.s32 1, %v385
  %v387 = vrot.slane %v378, %v386
  %v388 = vlaneseq
  %v389 = vshrl.u32 %v388, 7
  %v390 = vsub.s32 2, %v389
  %v391 = vrot.slane %v378, %v390
  %v392 = vlaneseq
  %v393 = vshrl.u32 %v392, 7
  %v394 = vsub.s32 3, %v393
  %v395 = vrot.slane %v378, %v394
  %v396 = vlaneseq
  %v397 = vshrl.u32 %v396, 7
  %v398 = vsub.s32 4, %v397
  %v399 = vrot.slane %v378, %v398
  %v400 = vlaneseq
  %v401 = vshrl.u32 %v400, 7
  %v402 = vsub.s32 5, %v401
  %v403 = vrot.slane %v378, %v402
  %v404 = vlaneseq
  %v405 = vshrl.u32 %v404, 7
  %v406 = vsub.s32 6, %v405
  %v407 = vrot.slane %v378, %v406
  %v408 = vlaneseq
  %v409 = vshrl.u32 %v408, 7
  %v410 = vsub.s32 7, %v409
  %v411 = vrot.slane %v378, %v410
  %v420 = vmul.f32 %v288, %v383
  %v421 = vmul.f32 %v290, %v387
  %v422 = vmul.f32 %v292, %v391
  %v423 = vmul.f32 %v294, %v395
  %v424 = vmul.f32 %v296, %v399
  %v425 = vmul.f32 %v298, %v403
  %v426 = vmul.f32 %v300, %v407
  %v427 = vmul.f32 %v302, %v411
  %429 = vset.pattern.permute.xlu0 0
  %430 = vperm.xlu0 %429, %v420
  %v431 = vpop.permute.xlu0 %430
  %v432 = vlaneseq
  %v433 = vshrl.u32 %v432, 7
  %v434 = vsub.s32 %v186, %v433
  %v435 = vrot.slane %v431, %v434
  %v436 = vsel %vm234, %v435, 0
  %438 = vmatprep.subr.mxu0 0.0
  %439 = vmatpush1.msra.mxu0 %v11
  %440 = vmatprep.subr.mxu0 0.0
  %441 = vmatpush1.msra.mxu0 0.0
  %442 = vmatprep.subr.mxu0 0.0
  %443 = vmatpush1.msra.mxu0 0.0
  %444 = vmatprep.subr.mxu0 0.0
  %445 = vmatpush1.msra.mxu0 0.0
  %446 = vmatprep.subr.mxu0 0.0
  %447 = vmatpush1.msra.mxu0 0.0
  %448 = vmatprep.subr.mxu0 0.0
  %449 = vmatpush1.msra.mxu0 0.0
  %450 = vmatprep.subr.mxu0 0.0
  %451 = vmatpush1.msra.mxu0 0.0
  %452 = vmatprep.subr.mxu0 0.0
  %453 = vmatpush1.msra.mxu0 0.0
  %454 = vmatprep.subr.mxu0 0.0
  %455 = vmatpush1.msra.mxu0 0.0
  %456 = vmatprep.subr.mxu0 0.0
  %457 = vmatpush1.msra.mxu0 0.0
  %458 = vmatprep.subr.mxu0 0.0
  %459 = vmatpush1.msra.mxu0 0.0
  %460 = vmatprep.subr.mxu0 0.0
  %461 = vmatpush1.msra.mxu0 0.0
  %462 = vmatprep.subr.mxu0 0.0
  %463 = vmatpush1.msra.mxu0 0.0
  %464 = vmatprep.subr.mxu0 0.0
  %465 = vmatpush1.msra.mxu0 0.0
  %466 = vmatprep.subr.mxu0 0.0
  %467 = vmatpush1.msra.mxu0 0.0
  %468 = vmatprep.subr.mxu0 0.0
  %469 = vmatpush1.msra.mxu0 0.0
  %470 = vmatprep.subr.mxu0 0.0
  %471 = vmatpush1.msra.mxu0 0.0
  %472 = vmatprep.subr.mxu0 0.0
  %473 = vmatpush1.msra.mxu0 0.0
  %474 = vmatprep.subr.mxu0 0.0
  %475 = vmatpush1.msra.mxu0 0.0
  %476 = vmatprep.subr.mxu0 0.0
  %477 = vmatpush1.msra.mxu0 0.0
  %478 = vmatprep.subr.mxu0 0.0
  %479 = vmatpush1.msra.mxu0 0.0
  %480 = vmatprep.subr.mxu0 0.0
  %481 = vmatpush1.msra.mxu0 0.0
  %482 = vmatprep.subr.mxu0 0.0
  %483 = vmatpush1.msra.mxu0 0.0
  %484 = vmatprep.subr.mxu0 0.0
  %485 = vmatpush1.msra.mxu0 0.0
  %486 = vmatprep.subr.mxu0 0.0
  %487 = vmatpush1.msra.mxu0 0.0
  %488 = vmatprep.subr.mxu0 0.0
  %489 = vmatpush1.msra.mxu0 0.0
  %490 = vmatprep.subr.mxu0 0.0
  %491 = vmatpush1.msra.mxu0 0.0
  %492 = vmatprep.subr.mxu0 0.0
  %493 = vmatpush1.msra.mxu0 0.0
  %494 = vmatprep.subr.mxu0 0.0
  %495 = vmatpush1.msra.mxu0 0.0
  %496 = vmatprep.subr.mxu0 0.0
  %497 = vmatpush1.msra.mxu0 0.0
  %498 = vmatprep.subr.mxu0 0.0
  %499 = vmatpush1.msra.mxu0 0.0
  %500 = vmatprep.subr.mxu0 0.0
  %501 = vmatpush1.msra.mxu0 0.0
  %502 = vmatprep.mubr.f32.mxu0 0.0
  %503 = vmatmul.mubr.f32.gmra.mrb[0].mxu0 %v436
  %v504 = vpop.f32.mrb[0].mxu0
  %v505 = vadd.f32 0.0, %v504
  %v506 = vpop.f32.mrb[0].mxu0
  %507 = vdwg.mxu0
  %509 = vset.pattern.permute.xlu0 0
  %510 = vperm.xlu0 %509, %v421
  %v511 = vpop.permute.xlu0 %510
  %v512 = vlaneseq
  %v513 = vshrl.u32 %v512, 7
  %v514 = vsub.s32 %v186, %v513
  %v515 = vrot.slane %v511, %v514
  %v516 = vsel %vm234, %v515, 0
  %518 = vmatprep.subr.mxu0 0.0
  %519 = vmatpush1.msra.mxu0 %v12
  %520 = vmatprep.subr.mxu0 0.0
  %521 = vmatpush1.msra.mxu0 0.0
  %522 = vmatprep.subr.mxu0 0.0
  %523 = vmatpush1.msra.mxu0 0.0
  %524 = vmatprep.subr.mxu0 0.0
  %525 = vmatpush1.msra.mxu0 0.0
  %526 = vmatprep.subr.mxu0 0.0
  %527 = vmatpush1.msra.mxu0 0.0
  %528 = vmatprep.subr.mxu0 0.0
  %529 = vmatpush1.msra.mxu0 0.0
  %530 = vmatprep.subr.mxu0 0.0
  %531 = vmatpush1.msra.mxu0 0.0
  %532 = vmatprep.subr.mxu0 0.0
  %533 = vmatpush1.msra.mxu0 0.0
  %534 = vmatprep.subr.mxu0 0.0
  %535 = vmatpush1.msra.mxu0 0.0
  %536 = vmatprep.subr.mxu0 0.0
  %537 = vmatpush1.msra.mxu0 0.0
  %538 = vmatprep.subr.mxu0 0.0
  %539 = vmatpush1.msra.mxu0 0.0
  %540 = vmatprep.subr.mxu0 0.0
  %541 = vmatpush1.msra.mxu0 0.0
  %542 = vmatprep.subr.mxu0 0.0
  %543 = vmatpush1.msra.mxu0 0.0
  %544 = vmatprep.subr.mxu0 0.0
  %545 = vmatpush1.msra.mxu0 0.0
  %546 = vmatprep.subr.mxu0 0.0
  %547 = vmatpush1.msra.mxu0 0.0
  %548 = vmatprep.subr.mxu0 0.0
  %549 = vmatpush1.msra.mxu0 0.0
  %550 = vmatprep.subr.mxu0 0.0
  %551 = vmatpush1.msra.mxu0 0.0
  %552 = vmatprep.subr.mxu0 0.0
  %553 = vmatpush1.msra.mxu0 0.0
  %554 = vmatprep.subr.mxu0 0.0
  %555 = vmatpush1.msra.mxu0 0.0
  %556 = vmatprep.subr.mxu0 0.0
  %557 = vmatpush1.msra.mxu0 0.0
  %558 = vmatprep.subr.mxu0 0.0
  %559 = vmatpush1.msra.mxu0 0.0
  %560 = vmatprep.subr.mxu0 0.0
  %561 = vmatpush1.msra.mxu0 0.0
  %562 = vmatprep.subr.mxu0 0.0
  %563 = vmatpush1.msra.mxu0 0.0
  %564 = vmatprep.subr.mxu0 0.0
  %565 = vmatpush1.msra.mxu0 0.0
  %566 = vmatprep.subr.mxu0 0.0
  %567 = vmatpush1.msra.mxu0 0.0
  %568 = vmatprep.subr.mxu0 0.0
  %569 = vmatpush1.msra.mxu0 0.0
  %570 = vmatprep.subr.mxu0 0.0
  %571 = vmatpush1.msra.mxu0 0.0
  %572 = vmatprep.subr.mxu0 0.0
  %573 = vmatpush1.msra.mxu0 0.0
  %574 = vmatprep.subr.mxu0 0.0
  %575 = vmatpush1.msra.mxu0 0.0
  %576 = vmatprep.subr.mxu0 0.0
  %577 = vmatpush1.msra.mxu0 0.0
  %578 = vmatprep.subr.mxu0 0.0
  %579 = vmatpush1.msra.mxu0 0.0
  %580 = vmatprep.subr.mxu0 0.0
  %581 = vmatpush1.msra.mxu0 0.0
  %582 = vmatprep.mubr.f32.mxu0 0.0
  %583 = vmatmul.mubr.f32.gmra.mrb[0].mxu0 %v516
  %v584 = vpop.f32.mrb[0].mxu0
  %v585 = vadd.f32 0.0, %v584
  %v586 = vpop.f32.mrb[0].mxu0
  %587 = vdwg.mxu0
  %589 = vset.pattern.permute.xlu0 0
  %590 = vperm.xlu0 %589, %v422
  %v591 = vpop.permute.xlu0 %590
  %v592 = vlaneseq
  %v593 = vshrl.u32 %v592, 7
  %v594 = vsub.s32 %v186, %v593
  %v595 = vrot.slane %v591, %v594
  %v596 = vsel %vm234, %v595, 0
  %598 = vmatprep.subr.mxu0 0.0
  %599 = vmatpush1.msra.mxu0 %v13
  %600 = vmatprep.subr.mxu0 0.0
  %601 = vmatpush1.msra.mxu0 0.0
  %602 = vmatprep.subr.mxu0 0.0
  %603 = vmatpush1.msra.mxu0 0.0
  %604 = vmatprep.subr.mxu0 0.0
  %605 = vmatpush1.msra.mxu0 0.0
  %606 = vmatprep.subr.mxu0 0.0
  %607 = vmatpush1.msra.mxu0 0.0
  %608 = vmatprep.subr.mxu0 0.0
  %609 = vmatpush1.msra.mxu0 0.0
  %610 = vmatprep.subr.mxu0 0.0
  %611 = vmatpush1.msra.mxu0 0.0
  %612 = vmatprep.subr.mxu0 0.0
  %613 = vmatpush1.msra.mxu0 0.0
  %614 = vmatprep.subr.mxu0 0.0
  %615 = vmatpush1.msra.mxu0 0.0
  %616 = vmatprep.subr.mxu0 0.0
  %617 = vmatpush1.msra.mxu0 0.0
  %618 = vmatprep.subr.mxu0 0.0
  %619 = vmatpush1.msra.mxu0 0.0
  %620 = vmatprep.subr.mxu0 0.0
  %621 = vmatpush1.msra.mxu0 0.0
  %622 = vmatprep.subr.mxu0 0.0
  %623 = vmatpush1.msra.mxu0 0.0
  %624 = vmatprep.subr.mxu0 0.0
  %625 = vmatpush1.msra.mxu0 0.0
  %626 = vmatprep.subr.mxu0 0.0
  %627 = vmatpush1.msra.mxu0 0.0
  %628 = vmatprep.subr.mxu0 0.0
  %629 = vmatpush1.msra.mxu0 0.0
  %630 = vmatprep.subr.mxu0 0.0
  %631 = vmatpush1.msra.mxu0 0.0
  %632 = vmatprep.subr.mxu0 0.0
  %633 = vmatpush1.msra.mxu0 0.0
  %634 = vmatprep.subr.mxu0 0.0
  %635 = vmatpush1.msra.mxu0 0.0
  %636 = vmatprep.subr.mxu0 0.0
  %637 = vmatpush1.msra.mxu0 0.0
  %638 = vmatprep.subr.mxu0 0.0
  %639 = vmatpush1.msra.mxu0 0.0
  %640 = vmatprep.subr.mxu0 0.0
  %641 = vmatpush1.msra.mxu0 0.0
  %642 = vmatprep.subr.mxu0 0.0
  %643 = vmatpush1.msra.mxu0 0.0
  %644 = vmatprep.subr.mxu0 0.0
  %645 = vmatpush1.msra.mxu0 0.0
  %646 = vmatprep.subr.mxu0 0.0
  %647 = vmatpush1.msra.mxu0 0.0
  %648 = vmatprep.subr.mxu0 0.0
  %649 = vmatpush1.msra.mxu0 0.0
  %650 = vmatprep.subr.mxu0 0.0
  %651 = vmatpush1.msra.mxu0 0.0
  %652 = vmatprep.subr.mxu0 0.0
  %653 = vmatpush1.msra.mxu0 0.0
  %654 = vmatprep.subr.mxu0 0.0
  %655 = vmatpush1.msra.mxu0 0.0
  %656 = vmatprep.subr.mxu0 0.0
  %657 = vmatpush1.msra.mxu0 0.0
  %658 = vmatprep.subr.mxu0 0.0
  %659 = vmatpush1.msra.mxu0 0.0
  %660 = vmatprep.subr.mxu0 0.0
  %661 = vmatpush1.msra.mxu0 0.0
  %662 = vmatprep.mubr.f32.mxu0 0.0
  %663 = vmatmul.mubr.f32.gmra.mrb[0].mxu0 %v596
  %v664 = vpop.f32.mrb[0].mxu0
  %v665 = vadd.f32 0.0, %v664
  %v666 = vpop.f32.mrb[0].mxu0
  %667 = vdwg.mxu0
  %669 = vset.pattern.permute.xlu0 0
  %670 = vperm.xlu0 %669, %v423
  %v671 = vpop.permute.xlu0 %670
  %v672 = vlaneseq
  %v673 = vshrl.u32 %v672, 7
  %v674 = vsub.s32 %v186, %v673
  %v675 = vrot.slane %v671, %v674
  %v676 = vsel %vm234, %v675, 0
  %678 = vmatprep.subr.mxu0 0.0
  %679 = vmatpush1.msra.mxu0 %v14
  %680 = vmatprep.subr.mxu0 0.0
  %681 = vmatpush1.msra.mxu0 0.0
  %682 = vmatprep.subr.mxu0 0.0
  %683 = vmatpush1.msra.mxu0 0.0
  %684 = vmatprep.subr.mxu0 0.0
  %685 = vmatpush1.msra.mxu0 0.0
  %686 = vmatprep.subr.mxu0 0.0
  %687 = vmatpush1.msra.mxu0 0.0
  %688 = vmatprep.subr.mxu0 0.0
  %689 = vmatpush1.msra.mxu0 0.0
  %690 = vmatprep.subr.mxu0 0.0
  %691 = vmatpush1.msra.mxu0 0.0
  %692 = vmatprep.subr.mxu0 0.0
  %693 = vmatpush1.msra.mxu0 0.0
  %694 = vmatprep.subr.mxu0 0.0
  %695 = vmatpush1.msra.mxu0 0.0
  %696 = vmatprep.subr.mxu0 0.0
  %697 = vmatpush1.msra.mxu0 0.0
  %698 = vmatprep.subr.mxu0 0.0
  %699 = vmatpush1.msra.mxu0 0.0
  %700 = vmatprep.subr.mxu0 0.0
  %701 = vmatpush1.msra.mxu0 0.0
  %702 = vmatprep.subr.mxu0 0.0
  %703 = vmatpush1.msra.mxu0 0.0
  %704 = vmatprep.subr.mxu0 0.0
  %705 = vmatpush1.msra.mxu0 0.0
  %706 = vmatprep.subr.mxu0 0.0
  %707 = vmatpush1.msra.mxu0 0.0
  %708 = vmatprep.subr.mxu0 0.0
  %709 = vmatpush1.msra.mxu0 0.0
  %710 = vmatprep.subr.mxu0 0.0
  %711 = vmatpush1.msra.mxu0 0.0
  %712 = vmatprep.subr.mxu0 0.0
  %713 = vmatpush1.msra.mxu0 0.0
  %714 = vmatprep.subr.mxu0 0.0
  %715 = vmatpush1.msra.mxu0 0.0
  %716 = vmatprep.subr.mxu0 0.0
  %717 = vmatpush1.msra.mxu0 0.0
  %718 = vmatprep.subr.mxu0 0.0
  %719 = vmatpush1.msra.mxu0 0.0
  %720 = vmatprep.subr.mxu0 0.0
  %721 = vmatpush1.msra.mxu0 0.0
  %722 = vmatprep.subr.mxu0 0.0
  %723 = vmatpush1.msra.mxu0 0.0
  %724 = vmatprep.subr.mxu0 0.0
  %725 = vmatpush1.msra.mxu0 0.0
  %726 = vmatprep.subr.mxu0 0.0
  %727 = vmatpush1.msra.mxu0 0.0
  %728 = vmatprep.subr.mxu0 0.0
  %729 = vmatpush1.msra.mxu0 0.0
  %730 = vmatprep.subr.mxu0 0.0
  %731 = vmatpush1.msra.mxu0 0.0
  %732 = vmatprep.subr.mxu0 0.0
  %733 = vmatpush1.msra.mxu0 0.0
  %734 = vmatprep.subr.mxu0 0.0
  %735 = vmatpush1.msra.mxu0 0.0
  %736 = vmatprep.subr.mxu0 0.0
  %737 = vmatpush1.msra.mxu0 0.0
  %738 = vmatprep.subr.mxu0 0.0
  %739 = vmatpush1.msra.mxu0 0.0
  %740 = vmatprep.subr.mxu0 0.0
  %741 = vmatpush1.msra.mxu0 0.0
  %742 = vmatprep.mubr.f32.mxu0 0.0
  %743 = vmatmul.mubr.f32.gmra.mrb[0].mxu0 %v676
  %v744 = vpop.f32.mrb[0].mxu0
  %v745 = vadd.f32 0.0, %v744
  %v746 = vpop.f32.mrb[0].mxu0
  %747 = vdwg.mxu0
  %749 = vset.pattern.permute.xlu0 0
  %750 = vperm.xlu0 %749, %v424
  %v751 = vpop.permute.xlu0 %750
  %v752 = vlaneseq
  %v753 = vshrl.u32 %v752, 7
  %v754 = vsub.s32 %v186, %v753
  %v755 = vrot.slane %v751, %v754
  %v756 = vsel %vm234, %v755, 0
  %758 = vmatprep.subr.mxu0 0.0
  %759 = vmatpush1.msra.mxu0 %v15
  %760 = vmatprep.subr.mxu0 0.0
  %761 = vmatpush1.msra.mxu0 0.0
  %762 = vmatprep.subr.mxu0 0.0
  %763 = vmatpush1.msra.mxu0 0.0
  %764 = vmatprep.subr.mxu0 0.0
  %765 = vmatpush1.msra.mxu0 0.0
  %766 = vmatprep.subr.mxu0 0.0
  %767 = vmatpush1.msra.mxu0 0.0
  %768 = vmatprep.subr.mxu0 0.0
  %769 = vmatpush1.msra.mxu0 0.0
  %770 = vmatprep.subr.mxu0 0.0
  %771 = vmatpush1.msra.mxu0 0.0
  %772 = vmatprep.subr.mxu0 0.0
  %773 = vmatpush1.msra.mxu0 0.0
  %774 = vmatprep.subr.mxu0 0.0
  %775 = vmatpush1.msra.mxu0 0.0
  %776 = vmatprep.subr.mxu0 0.0
  %777 = vmatpush1.msra.mxu0 0.0
  %778 = vmatprep.subr.mxu0 0.0
  %779 = vmatpush1.msra.mxu0 0.0
  %780 = vmatprep.subr.mxu0 0.0
  %781 = vmatpush1.msra.mxu0 0.0
  %782 = vmatprep.subr.mxu0 0.0
  %783 = vmatpush1.msra.mxu0 0.0
  %784 = vmatprep.subr.mxu0 0.0
  %785 = vmatpush1.msra.mxu0 0.0
  %786 = vmatprep.subr.mxu0 0.0
  %787 = vmatpush1.msra.mxu0 0.0
  %788 = vmatprep.subr.mxu0 0.0
  %789 = vmatpush1.msra.mxu0 0.0
  %790 = vmatprep.subr.mxu0 0.0
  %791 = vmatpush1.msra.mxu0 0.0
  %792 = vmatprep.subr.mxu0 0.0
  %793 = vmatpush1.msra.mxu0 0.0
  %794 = vmatprep.subr.mxu0 0.0
  %795 = vmatpush1.msra.mxu0 0.0
  %796 = vmatprep.subr.mxu0 0.0
  %797 = vmatpush1.msra.mxu0 0.0
  %798 = vmatprep.subr.mxu0 0.0
  %799 = vmatpush1.msra.mxu0 0.0
  %800 = vmatprep.subr.mxu0 0.0
  %801 = vmatpush1.msra.mxu0 0.0
  %802 = vmatprep.subr.mxu0 0.0
  %803 = vmatpush1.msra.mxu0 0.0
  %804 = vmatprep.subr.mxu0 0.0
  %805 = vmatpush1.msra.mxu0 0.0
  %806 = vmatprep.subr.mxu0 0.0
  %807 = vmatpush1.msra.mxu0 0.0
  %808 = vmatprep.subr.mxu0 0.0
  %809 = vmatpush1.msra.mxu0 0.0
  %810 = vmatprep.subr.mxu0 0.0
  %811 = vmatpush1.msra.mxu0 0.0
  %812 = vmatprep.subr.mxu0 0.0
  %813 = vmatpush1.msra.mxu0 0.0
  %814 = vmatprep.subr.mxu0 0.0
  %815 = vmatpush1.msra.mxu0 0.0
  %816 = vmatprep.subr.mxu0 0.0
  %817 = vmatpush1.msra.mxu0 0.0
  %818 = vmatprep.subr.mxu0 0.0
  %819 = vmatpush1.msra.mxu0 0.0
  %820 = vmatprep.subr.mxu0 0.0
  %821 = vmatpush1.msra.mxu0 0.0
  %822 = vmatprep.mubr.f32.mxu0 0.0
  %823 = vmatmul.mubr.f32.gmra.mrb[0].mxu0 %v756
  %v824 = vpop.f32.mrb[0].mxu0
  %v825 = vadd.f32 0.0, %v824
  %v826 = vpop.f32.mrb[0].mxu0
  %827 = vdwg.mxu0
  %829 = vset.pattern.permute.xlu0 0
  %830 = vperm.xlu0 %829, %v425
  %v831 = vpop.permute.xlu0 %830
  %v832 = vlaneseq
  %v833 = vshrl.u32 %v832, 7
  %v834 = vsub.s32 %v186, %v833
  %v835 = vrot.slane %v831, %v834
  %v836 = vsel %vm234, %v835, 0
  %838 = vmatprep.subr.mxu0 0.0
  %839 = vmatpush1.msra.mxu0 %v16
  %840 = vmatprep.subr.mxu0 0.0
  %841 = vmatpush1.msra.mxu0 0.0
  %842 = vmatprep.subr.mxu0 0.0
  %843 = vmatpush1.msra.mxu0 0.0
  %844 = vmatprep.subr.mxu0 0.0
  %845 = vmatpush1.msra.mxu0 0.0
  %846 = vmatprep.subr.mxu0 0.0
  %847 = vmatpush1.msra.mxu0 0.0
  %848 = vmatprep.subr.mxu0 0.0
  %849 = vmatpush1.msra.mxu0 0.0
  %850 = vmatprep.subr.mxu0 0.0
  %851 = vmatpush1.msra.mxu0 0.0
  %852 = vmatprep.subr.mxu0 0.0
  %853 = vmatpush1.msra.mxu0 0.0
  %854 = vmatprep.subr.mxu0 0.0
  %855 = vmatpush1.msra.mxu0 0.0
  %856 = vmatprep.subr.mxu0 0.0
  %857 = vmatpush1.msra.mxu0 0.0
  %858 = vmatprep.subr.mxu0 0.0
  %859 = vmatpush1.msra.mxu0 0.0
  %860 = vmatprep.subr.mxu0 0.0
  %861 = vmatpush1.msra.mxu0 0.0
  %862 = vmatprep.subr.mxu0 0.0
  %863 = vmatpush1.msra.mxu0 0.0
  %864 = vmatprep.subr.mxu0 0.0
  %865 = vmatpush1.msra.mxu0 0.0
  %866 = vmatprep.subr.mxu0 0.0
  %867 = vmatpush1.msra.mxu0 0.0
  %868 = vmatprep.subr.mxu0 0.0
  %869 = vmatpush1.msra.mxu0 0.0
  %870 = vmatprep.subr.mxu0 0.0
  %871 = vmatpush1.msra.mxu0 0.0
  %872 = vmatprep.subr.mxu0 0.0
  %873 = vmatpush1.msra.mxu0 0.0
  %874 = vmatprep.subr.mxu0 0.0
  %875 = vmatpush1.msra.mxu0 0.0
  %876 = vmatprep.subr.mxu0 0.0
  %877 = vmatpush1.msra.mxu0 0.0
  %878 = vmatprep.subr.mxu0 0.0
  %879 = vmatpush1.msra.mxu0 0.0
  %880 = vmatprep.subr.mxu0 0.0
  %881 = vmatpush1.msra.mxu0 0.0
  %882 = vmatprep.subr.mxu0 0.0
  %883 = vmatpush1.msra.mxu0 0.0
  %884 = vmatprep.subr.mxu0 0.0
  %885 = vmatpush1.msra.mxu0 0.0
  %886 = vmatprep.subr.mxu0 0.0
  %887 = vmatpush1.msra.mxu0 0.0
  %888 = vmatprep.subr.mxu0 0.0
  %889 = vmatpush1.msra.mxu0 0.0
  %890 = vmatprep.subr.mxu0 0.0
  %891 = vmatpush1.msra.mxu0 0.0
  %892 = vmatprep.subr.mxu0 0.0
  %893 = vmatpush1.msra.mxu0 0.0
  %894 = vmatprep.subr.mxu0 0.0
  %895 = vmatpush1.msra.mxu0 0.0
  %896 = vmatprep.subr.mxu0 0.0
  %897 = vmatpush1.msra.mxu0 0.0
  %898 = vmatprep.subr.mxu0 0.0
  %899 = vmatpush1.msra.mxu0 0.0
  %900 = vmatprep.subr.mxu0 0.0
  %901 = vmatpush1.msra.mxu0 0.0
  %902 = vmatprep.mubr.f32.mxu0 0.0
  %903 = vmatmul.mubr.f32.gmra.mrb[0].mxu0 %v836
  %v904 = vpop.f32.mrb[0].mxu0
  %v905 = vadd.f32 0.0, %v904
  %v906 = vpop.f32.mrb[0].mxu0
  %907 = vdwg.mxu0
  %909 = vset.pattern.permute.xlu0 0
  %910 = vperm.xlu0 %909, %v426
  %v911 = vpop.permute.xlu0 %910
  %v912 = vlaneseq
  %v913 = vshrl.u32 %v912, 7
  %v914 = vsub.s32 %v186, %v913
  %v915 = vrot.slane %v911, %v914
  %v916 = vsel %vm234, %v915, 0
  %918 = vmatprep.subr.mxu0 0.0
  %919 = vmatpush1.msra.mxu0 %v17
  %920 = vmatprep.subr.mxu0 0.0
  %921 = vmatpush1.msra.mxu0 0.0
  %922 = vmatprep.subr.mxu0 0.0
  %923 = vmatpush1.msra.mxu0 0.0
  %924 = vmatprep.subr.mxu0 0.0
  %925 = vmatpush1.msra.mxu0 0.0
  %926 = vmatprep.subr.mxu0 0.0
  %927 = vmatpush1.msra.mxu0 0.0
  %928 = vmatprep.subr.mxu0 0.0
  %929 = vmatpush1.msra.mxu0 0.0
  %930 = vmatprep.subr.mxu0 0.0
  %931 = vmatpush1.msra.mxu0 0.0
  %932 = vmatprep.subr.mxu0 0.0
  %933 = vmatpush1.msra.mxu0 0.0
  %934 = vmatprep.subr.mxu0 0.0
  %935 = vmatpush1.msra.mxu0 0.0
  %936 = vmatprep.subr.mxu0 0.0
  %937 = vmatpush1.msra.mxu0 0.0
  %938 = vmatprep.subr.mxu0 0.0
  %939 = vmatpush1.msra.mxu0 0.0
  %940 = vmatprep.subr.mxu0 0.0
  %941 = vmatpush1.msra.mxu0 0.0
  %942 = vmatprep.subr.mxu0 0.0
  %943 = vmatpush1.msra.mxu0 0.0
  %944 = vmatprep.subr.mxu0 0.0
  %945 = vmatpush1.msra.mxu0 0.0
  %946 = vmatprep.subr.mxu0 0.0
  %947 = vmatpush1.msra.mxu0 0.0
  %948 = vmatprep.subr.mxu0 0.0
  %949 = vmatpush1.msra.mxu0 0.0
  %950 = vmatprep.subr.mxu0 0.0
  %951 = vmatpush1.msra.mxu0 0.0
  %952 = vmatprep.subr.mxu0 0.0
  %953 = vmatpush1.msra.mxu0 0.0
  %954 = vmatprep.subr.mxu0 0.0
  %955 = vmatpush1.msra.mxu0 0.0
  %956 = vmatprep.subr.mxu0 0.0
  %957 = vmatpush1.msra.mxu0 0.0
  %958 = vmatprep.subr.mxu0 0.0
  %959 = vmatpush1.msra.mxu0 0.0
  %960 = vmatprep.subr.mxu0 0.0
  %961 = vmatpush1.msra.mxu0 0.0
  %962 = vmatprep.subr.mxu0 0.0
  %963 = vmatpush1.msra.mxu0 0.0
  %964 = vmatprep.subr.mxu0 0.0
  %965 = vmatpush1.msra.mxu0 0.0
  %966 = vmatprep.subr.mxu0 0.0
  %967 = vmatpush1.msra.mxu0 0.0
  %968 = vmatprep.subr.mxu0 0.0
  %969 = vmatpush1.msra.mxu0 0.0
  %970 = vmatprep.subr.mxu0 0.0
  %971 = vmatpush1.msra.mxu0 0.0
  %972 = vmatprep.subr.mxu0 0.0
  %973 = vmatpush1.msra.mxu0 0.0
  %974 = vmatprep.subr.mxu0 0.0
  %975 = vmatpush1.msra.mxu0 0.0
  %976 = vmatprep.subr.mxu0 0.0
  %977 = vmatpush1.msra.mxu0 0.0
  %978 = vmatprep.subr.mxu0 0.0
  %979 = vmatpush1.msra.mxu0 0.0
  %980 = vmatprep.subr.mxu0 0.0
  %981 = vmatpush1.msra.mxu0 0.0
  %982 = vmatprep.mubr.f32.mxu0 0.0
  %983 = vmatmul.mubr.f32.gmra.mrb[0].mxu0 %v916
  %v984 = vpop.f32.mrb[0].mxu0
  %v985 = vadd.f32 0.0, %v984
  %v986 = vpop.f32.mrb[0].mxu0
  %987 = vdwg.mxu0
  %989 = vset.pattern.permute.xlu0 0
  %990 = vperm.xlu0 %989, %v427
  %v991 = vpop.permute.xlu0 %990
  %v992 = vlaneseq
  %v993 = vshrl.u32 %v992, 7
  %v994 = vsub.s32 %v186, %v993
  %v995 = vrot.slane %v991, %v994
  %v996 = vsel %vm234, %v995, 0
  %998 = vmatprep.subr.mxu0 0.0
  %999 = vmatpush1.msra.mxu0 %v18
  %1000 = vmatprep.subr.mxu0 0.0
  %1001 = vmatpush1.msra.mxu0 0.0
  %1002 = vmatprep.subr.mxu0 0.0
  %1003 = vmatpush1.msra.mxu0 0.0
  %1004 = vmatprep.subr.mxu0 0.0
  %1005 = vmatpush1.msra.mxu0 0.0
  %1006 = vmatprep.subr.mxu0 0.0
  %1007 = vmatpush1.msra.mxu0 0.0
  %1008 = vmatprep.subr.mxu0 0.0
  %1009 = vmatpush1.msra.mxu0 0.0
  %1010 = vmatprep.subr.mxu0 0.0
  %1011 = vmatpush1.msra.mxu0 0.0
  %1012 = vmatprep.subr.mxu0 0.0
  %1013 = vmatpush1.msra.mxu0 0.0
  %1014 = vmatprep.subr.mxu0 0.0
  %1015 = vmatpush1.msra.mxu0 0.0
  %1016 = vmatprep.subr.mxu0 0.0
  %1017 = vmatpush1.msra.mxu0 0.0
  %1018 = vmatprep.subr.mxu0 0.0
  %1019 = vmatpush1.msra.mxu0 0.0
  %1020 = vmatprep.subr.mxu0 0.0
  %1021 = vmatpush1.msra.mxu0 0.0
  %1022 = vmatprep.subr.mxu0 0.0
  %1023 = vmatpush1.msra.mxu0 0.0
  %1024 = vmatprep.subr.mxu0 0.0
  %1025 = vmatpush1.msra.mxu0 0.0
  %1026 = vmatprep.subr.mxu0 0.0
  %1027 = vmatpush1.msra.mxu0 0.0
  %1028 = vmatprep.subr.mxu0 0.0
  %1029 = vmatpush1.msra.mxu0 0.0
  %1030 = vmatprep.subr.mxu0 0.0
  %1031 = vmatpush1.msra.mxu0 0.0
  %1032 = vmatprep.subr.mxu0 0.0
  %1033 = vmatpush1.msra.mxu0 0.0
  %1034 = vmatprep.subr.mxu0 0.0
  %1035 = vmatpush1.msra.mxu0 0.0
  %1036 = vmatprep.subr.mxu0 0.0
  %1037 = vmatpush1.msra.mxu0 0.0
  %1038 = vmatprep.subr.mxu0 0.0
  %1039 = vmatpush1.msra.mxu0 0.0
  %1040 = vmatprep.subr.mxu0 0.0
  %1041 = vmatpush1.msra.mxu0 0.0
  %1042 = vmatprep.subr.mxu0 0.0
  %1043 = vmatpush1.msra.mxu0 0.0
  %1044 = vmatprep.subr.mxu0 0.0
  %1045 = vmatpush1.msra.mxu0 0.0
  %1046 = vmatprep.subr.mxu0 0.0
  %1047 = vmatpush1.msra.mxu0 0.0
  %1048 = vmatprep.subr.mxu0 0.0
  %1049 = vmatpush1.msra.mxu0 0.0
  %1050 = vmatprep.subr.mxu0 0.0
  %1051 = vmatpush1.msra.mxu0 0.0
  %1052 = vmatprep.subr.mxu0 0.0
  %1053 = vmatpush1.msra.mxu0 0.0
  %1054 = vmatprep.subr.mxu0 0.0
  %1055 = vmatpush1.msra.mxu0 0.0
  %1056 = vmatprep.subr.mxu0 0.0
  %1057 = vmatpush1.msra.mxu0 0.0
  %1058 = vmatprep.subr.mxu0 0.0
  %1059 = vmatpush1.msra.mxu0 0.0
  %1060 = vmatprep.subr.mxu0 0.0
  %1061 = vmatpush1.msra.mxu0 0.0
  %1062 = vmatprep.mubr.f32.mxu0 0.0
  %1063 = vmatmul.mubr.f32.gmra.mrb[0].mxu0 %v996
  %v1064 = vpop.f32.mrb[0].mxu0
  %v1065 = vadd.f32 0.0, %v1064
  %v1066 = vpop.f32.mrb[0].mxu0
  %1067 = vdwg.mxu0
  %v1076 = vrot.slane %v585, 7
  %v1077 = vsel %vm219, %v1076, %v505
  %v1078 = vrot.slane %v665, 6
  %v1079 = vsel %vm221, %v1078, %v1077
  %v1080 = vrot.slane %v745, 5
  %v1081 = vsel %vm223, %v1080, %v1079
  %v1082 = vrot.slane %v825, 4
  %v1083 = vsel %vm225, %v1082, %v1081
  %v1084 = vrot.slane %v905, 3
  %v1085 = vsel %vm227, %v1084, %v1083
  %v1086 = vrot.slane %v985, 2
  %v1087 = vsel %vm229, %v1086, %v1085
  %v1088 = vrot.slane %v1065, 1
  %v1089 = vsel %vm231, %v1088, %v1087
  %v1091 = vadd.s32 %v186, 4294967264
  %v1092 = vlaneseq
  %v1093 = vshrl.u32 %v1092, 7
  %v1094 = vsub.s32 %v1091, %v1093
  %v1095 = vrot.slane %v431, %v1094
  %v1096 = vlaneseq
  %v1097 = vshrl.u32 %v1096, 7
  %v1098 = vsub.s32 %v1091, %v1097
  %v1099 = vrot.slane %v511, %v1098
  %v1100 = vlaneseq
  %v1101 = vshrl.u32 %v1100, 7
  %v1102 = vsub.s32 %v1091, %v1101
  %v1103 = vrot.slane %v591, %v1102
  %v1104 = vlaneseq
  %v1105 = vshrl.u32 %v1104, 7
  %v1106 = vsub.s32 %v1091, %v1105
  %v1107 = vrot.slane %v671, %v1106
  %v1108 = vlaneseq
  %v1109 = vshrl.u32 %v1108, 7
  %v1110 = vsub.s32 %v1091, %v1109
  %v1111 = vrot.slane %v751, %v1110
  %v1112 = vlaneseq
  %v1113 = vshrl.u32 %v1112, 7
  %v1114 = vsub.s32 %v1091, %v1113
  %v1115 = vrot.slane %v831, %v1114
  %v1116 = vlaneseq
  %v1117 = vshrl.u32 %v1116, 7
  %v1118 = vsub.s32 %v1091, %v1117
  %v1119 = vrot.slane %v911, %v1118
  %v1120 = vlaneseq
  %v1121 = vshrl.u32 %v1120, 7
  %v1122 = vsub.s32 %v1091, %v1121
  %v1123 = vrot.slane %v991, %v1122
  %v1124 = vsel %vm219, %v1099, %v1095
  %v1125 = vsel %vm221, %v1103, %v1124
  %v1126 = vsel %vm223, %v1107, %v1125
  %v1127 = vsel %vm225, %v1111, %v1126
  %v1128 = vsel %vm227, %v1115, %v1127
  %v1129 = vsel %vm229, %v1119, %v1128
  %v1130 = vsel %vm231, %v1123, %v1129
  %v1132 = vsel %vm23, %v1089, %v1130
  %vm1133 = vcmask 326656
  %v1134 = vsel %vm1133, %v1132, 0.0
  %1135 = vst [vmem:[%s2] sm:$0xff] %v1134
  // Predicated region
  $region10: #{mask_attention.1} parent=0 // pred_check
    _
  $region11: #{mask_attention.1} parent=0 // pred_check_branch
    %1137 = sbr.rel (0) target = $region13
  $region12: #{mask_attention.1} parent=0 // pred_region
    _
  $region13: #{mask_attention.1} parent=0 // pred_fallthru
    _
  // Predicated region
  $region14: #{mask_attention.1} parent=0 // pred_check
    _
  $region15: #{mask_attention.1} parent=0 // pred_check_branch
    %1139 = sbr.rel (0) target = $region17
  $region16: #{mask_attention.1} parent=0 // pred_region
    _
  $region17: #{mask_attention.1} parent=0 // pred_fallthru
    _

</llo_original>
